<compile_context>
chip_gen: v7x
topology: tpu7x:2x2x1
jax: 0.10.0
libtpu: 0.0.40
codegen_flags: <defaults>
</compile_context>

<pallas_src>
import functools

import jax
import jax.numpy as jnp
from jax.experimental import pallas as pl
from jax.experimental.pallas import tpu as pltpu

LANES = 128
MXU_DTYPE = jnp.bfloat16          # MXU operand dtype (accumulation stays f32)


def _round_up(x, m):
    return (x + m - 1) // m * m


# ---------------------------------------------------------------------------
# Fused Pallas kernel (one batch element x one output-row tile per grid step)
# ---------------------------------------------------------------------------

def _mnas_init_kernel(x_ref, w1_ref, wdw_ref, wpw_ref, b12_ref, b3_ref, o_ref,
                      *, true_h, true_w):
    """Fused MnasInitBlock forward for one (batch, row-tile) grid step.

    x_ref  : (1, 1, TH+2, Wop, KP)  bf16 im2col slab (stride-2 3x3 taps, K = 9*Cin padded)
    w1_ref : (KP, CP)               bf16 conv1 weights, BN1 scale folded in
    wdw_ref: (9, CP)                f32  depthwise taps, BN2 scale folded in
    wpw_ref: (CP, CQ)               bf16 pointwise weights, BN3 scale folded in
    b12_ref: (2, CP)                f32  BN1 / BN2 shifts
    b3_ref : (1, CQ)                f32  BN3 shift
    o_ref  : (1, TH, Wop, C2)       bf16 channel-dense output tile
    """
    t = pl.program_id(1)
    _, th, wop, c2 = o_ref.shape
    thp = th + 2                                  # tile rows incl. depthwise halo
    kp = x_ref.shape[-1]
    cp = w1_ref.shape[-1]
    cq = wpw_ref.shape[-1]

    # ---- stage 1: single K=9*Cin im2col matmul on the MXU, + shift + ReLU ------------
    xs = x_ref[0, 0].reshape(thp * wop, kp)                       # (R, KP) bf16
    acc1 = jnp.dot(xs, w1_ref[...], preferred_element_type=jnp.float32)
    y1 = jnp.maximum(acc1 + b12_ref[0], 0.0)                      # (R, CP) f32

    # Zero the rows that are the depthwise conv's zero padding: global rows outside
    # [0, true_h).  Row r of this tile is global row t*TH + r - 1; flattened index
    # f = r*Wop + j, so "r in [a, b)"  <=>  "f in [a*Wop, b*Wop)".
    f = jax.lax.broadcasted_iota(jnp.int32, (thp * wop, 1), 0)
    lo = (1 - t * th) * wop
    hi = (true_h - t * th + 1) * wop
    y1 = jnp.where(jnp.logical_and(f >= lo, f < hi), y1, 0.0)
    y1 = y1.reshape(thp, wop, cp)
    if wop > true_w:                                              # width padding columns
        cmask = jax.lax.broadcasted_iota(jnp.int32, (wop, cp), 0) < true_w
        y1 = jnp.where(cmask, y1, 0.0)

    # ---- stage 2: depthwise 3x3 (stride 1) on the VPU --------------------------------
    # W +-1 shifts: two shifted copies with an explicit zero column; H shifts: leading-
    # axis slices (free).  Halo rows/columns of y1 are exactly zero by construction.
    zcol = jnp.zeros((thp, 1, cp), jnp.float32)
    y_l = jnp.concatenate([zcol, y1[:, :wop - 1, :]], axis=1)     # col j -> y1[:, j-1]
    y_r = jnp.concatenate([y1[:, 1:, :], zcol], axis=1)           # col j -> y1[:, j+1]

    acc2 = jnp.zeros((th, wop, cp), jnp.float32)
    for kh in range(3):
        for kw, src in enumerate((y_l, y1, y_r)):
            acc2 = acc2 + src[kh:kh + th] * wdw_ref[kh * 3 + kw]
    y2 = jnp.maximum(acc2 + b12_ref[1], 0.0)                      # (TH, Wop, CP) f32

    # ---- stage 3: pointwise 1x1 on the MXU, + shift + ReLU, channel-dense bf16 store -
    y3 = jnp.dot(y2.reshape(th * wop, cp).astype(wpw_ref.dtype), wpw_ref[...],
                 preferred_element_type=jnp.float32)
    y3 = jnp.maximum(y3 + b3_ref[0], 0.0)
    o_ref[0] = y3.reshape(th, wop, cq)[:, :, :c2].astype(o_ref.dtype)


# ---------------------------------------------------------------------------
# Wrapper (BN folding, im2col layout, channel padding, tiling)
# ---------------------------------------------------------------------------

def _bn_fold(gamma, beta, mean, var, eps=1e-5):
    scale = gamma / jnp.sqrt(var + eps)
    return scale, beta - mean * scale


def _pad_last(a, target):
    return jnp.pad(a, [(0, 0)] * (a.ndim - 1) + [(0, target - a.shape[-1])])


def mnas_init_block(x_nchw, params, tile_h=16):
    x = jnp.transpose(x_nchw, (0, 2, 3, 1)).astype(jnp.float32)       # NCHW -> NHWC
    N, H, W, Cin = x.shape
    w1 = params["w1"]                                                 # (3,3,Cin,C1) HWIO
    C1 = w1.shape[-1]
    C2 = params["w_pw"].shape[-1]
    Ho, Wo = (H - 1) // 2 + 1, (W - 1) // 2 + 1                       # stride-2, pad-1

    TH = max(1, min(tile_h, Ho))                                      # output-row tile
    nT = pl.cdiv(Ho, TH)
    Hop = nT * TH                                                     # padded output rows
    Wop = _round_up(Wo, 8)                                            # sublane-friendly W
    CP = _round_up(C1, LANES)
    CQ = _round_up(C2, LANES)
    K = 9 * Cin
    KP = _round_up(K, 32)                                             # im2col K dim

    # ---- fold BN scales into the weights; keep only additive shifts ------------------
    s1, b1 = _bn_fold(params["bn1_g"], params["bn1_b"], params["bn1_m"], params["bn1_v"])
    s2, b2 = _bn_fold(params["bn2_g"], params["bn2_b"], params["bn2_m"], params["bn2_v"])
    s3, b3 = _bn_fold(params["bn3_g"], params["bn3_b"], params["bn3_m"], params["bn3_v"])

    w1p = jnp.pad((w1 * s1).reshape(K, C1),
                  ((0, KP - K), (0, CP - C1))).astype(MXU_DTYPE)                  # (KP,CP)
    wdwp = jnp.pad((params["w_dw"] * s2).reshape(9, C1),
                   ((0, 0), (0, CP - C1))).astype(jnp.float32)                    # (9,CP)
    wpwp = jnp.pad(params["w_pw"] * s3,
                   ((0, CP - C1), (0, CQ - C2))).astype(MXU_DTYPE)                # (CP,CQ)
    b12 = jnp.stack([_pad_last(b1, CP), _pad_last(b2, CP)]).astype(jnp.float32)   # (2,CP)
    b3p = _pad_last(b3, CQ).reshape(1, CQ).astype(jnp.float32)                    # (1,CQ)

    # ---- stride-2 3x3 im2col (K = 9*Cin minor dim; no lane-dim-of-3 operand) ----------
    pad_b = 2 * Hop - H
    pad_r = 2 * Wop - W
    xp = jnp.pad(x, ((0, 0), (1, pad_b), (1, pad_r), (0, 0)))
    taps = [xp[:, kh:kh + 2 * Hop:2, kw:kw + 2 * Wop:2, :]
            for kh in range(3) for kw in range(3)]
    im2col = jnp.concatenate(taps, axis=-1)                           # (N,Hop,Wop,9*Cin)
    im2col = _pad_last(im2col, KP).astype(MXU_DTYPE)
    im2col = jnp.pad(im2col, ((0, 0), (1, 1), (0, 0), (0, 0)))        # depthwise halo rows
    # Per-tile overlapping slabs (each tile recomputes one halo row of y1 on both sides;
    # ~2/TH extra HBM bytes buys disjoint, trivially pipelined blocks).
    slabs = jnp.stack([im2col[:, t * TH:t * TH + TH + 2] for t in range(nT)], axis=1)
    # slabs: (N, nT, TH+2, Wop, KP)

    kernel = functools.partial(_mnas_init_kernel, true_h=Ho, true_w=Wo)
    out = pl.pallas_call(
        kernel,
        out_shape=jax.ShapeDtypeStruct((N, Hop, Wop, C2), MXU_DTYPE),
        grid=(N, nT),
        in_specs=[
            pl.BlockSpec((1, 1, TH + 2, Wop, KP), lambda n, t: (n, t, 0, 0, 0)),
            pl.BlockSpec((KP, CP), lambda n, t: (0, 0)),
            pl.BlockSpec((9, CP), lambda n, t: (0, 0)),
            pl.BlockSpec((CP, CQ), lambda n, t: (0, 0)),
            pl.BlockSpec((2, CP), lambda n, t: (0, 0)),
            pl.BlockSpec((1, CQ), lambda n, t: (0, 0)),
        ],
        out_specs=pl.BlockSpec((1, TH, Wop, C2), lambda n, t: (n, t, 0, 0)),
        compiler_params=pltpu.CompilerParams(
            dimension_semantics=("parallel", "parallel")),
    )(slabs, w1p, wdwp, wpwp, b12, b3p)

    out = out[:, :Ho, :Wo, :].astype(jnp.float32)                     # strip row/col pad
    return jnp.transpose(out, (0, 3, 1, 2))                           # NHWC -> NCHW


# ---------------------------------------------------------------------------
# Pure-JAX reference (for correctness check)
# ---------------------------------------------------------------------------

def reference(x_nchw, params, eps=1e-5):
    def bn(y, g, b, m, v):
        return (y - m) / jnp.sqrt(v + eps) * g + b
    x = jnp.transpose(x_nchw, (0, 2, 3, 1)).astype(jnp.float32)
    dn = jax.lax.conv_dimension_numbers(x.shape, params["w1"].shape, ("NHWC", "HWIO", "NHWC"))
    y = jax.lax.conv_general_dilated(x, params["w1"], (2, 2), ((1, 1), (1, 1)),
                                     dimension_numbers=dn)
    y = jax.nn.relu(bn(y, params["bn1_g"], params["bn1_b"], params["bn1_m"], params["bn1_v"]))
    C1 = y.shape[-1]
    wdw = params["w_dw"].reshape(3, 3, 1, C1)
    dn2 = jax.lax.conv_dimension_numbers(y.shape, wdw.shape, ("NHWC", "HWIO", "NHWC"))
    y = jax.lax.conv_general_dilated(y, wdw, (1, 1), ((1, 1), (1, 1)),
                                     dimension_numbers=dn2, feature_group_count=C1)
    y = jax.nn.relu(bn(y, params["bn2_g"], params["bn2_b"], params["bn2_m"], params["bn2_v"]))
    y = jnp.einsum("nhwc,cd->nhwd", y, params["w_pw"])
    y = jax.nn.relu(bn(y, params["bn3_g"], params["bn3_b"], params["bn3_m"], params["bn3_v"]))
    return jnp.transpose(y, (0, 3, 1, 2))


# ---------------------------------------------------------------------------
# Main
# ---------------------------------------------------------------------------

if __name__ == "__main__":
    key = jax.random.PRNGKey(0)
    in_channels = 3
    C1, C2 = 8, 16
    N, H, W = 2, 16, 16

    keys = jax.random.split(key, 16)
    params = {
        "w1":    jax.random.normal(keys[0], (3, 3, in_channels, C1), jnp.float32) * 0.1,
        "bn1_g": 1.0 + 0.1 * jax.random.normal(keys[1], (C1,), jnp.float32),
        "bn1_b": 0.1 * jax.random.normal(keys[2], (C1,), jnp.float32),
        "bn1_m": 0.1 * jax.random.normal(keys[3], (C1,), jnp.float32),
        "bn1_v": 0.5 + jax.random.uniform(keys[4], (C1,), jnp.float32),
        "w_dw":  jax.random.normal(keys[5], (3, 3, C1), jnp.float32) * 0.1,
        "bn2_g": 1.0 + 0.1 * jax.random.normal(keys[6], (C1,), jnp.float32),
        "bn2_b": 0.1 * jax.random.normal(keys[7], (C1,), jnp.float32),
        "bn2_m": 0.1 * jax.random.normal(keys[8], (C1,), jnp.float32),
        "bn2_v": 0.5 + jax.random.uniform(keys[9], (C1,), jnp.float32),
        "w_pw":  jax.random.normal(keys[10], (C1, C2), jnp.float32) * 0.1,
        "bn3_g": 1.0 + 0.1 * jax.random.normal(keys[11], (C2,), jnp.float32),
        "bn3_b": 0.1 * jax.random.normal(keys[12], (C2,), jnp.float32),
        "bn3_m": 0.1 * jax.random.normal(keys[13], (C2,), jnp.float32),
        "bn3_v": 0.5 + jax.random.uniform(keys[14], (C2,), jnp.float32),
    }

    x = jax.random.normal(keys[15], (N, in_channels, H, W), jnp.float32)   # NCHW like PyTorch

    # tile_h=4 -> nT=2: exercises the Ho tiling + halo-recompute + row-mask paths.
    fwd = jax.jit(functools.partial(mnas_init_block, tile_h=4))
    out = jax.block_until_ready(fwd(x, params))
    ref = jax.block_until_ready(reference(x, params))

    assert out.shape == (N, C2, H // 2, W // 2), out.shape
    # bf16 MXU operands + bf16 output writeback -> relaxed tolerance vs the f32 reference
    assert jnp.allclose(out, ref, atol=2e-2, rtol=2e-2), float(jnp.max(jnp.abs(out - ref)))

    print("KERNEL_OK")
</pallas_src>

<mosaic_0001>
module attributes {stable_mosaic.version = 11 : i64} {
  func.func @_mnas_init_kernel(%arg0: i32, %arg1: i32, %arg2: memref<1x1x6x8x32xbf16, #tpu.memory_space<vmem>>, %arg3: memref<32x128xbf16, #tpu.memory_space<vmem>>, %arg4: memref<9x128xf32, #tpu.memory_space<vmem>>, %arg5: memref<128x128xbf16, #tpu.memory_space<vmem>>, %arg6: memref<2x128xf32, #tpu.memory_space<vmem>>, %arg7: memref<1x128xf32, #tpu.memory_space<vmem>>, %arg8: memref<1x4x8x16xbf16, #tpu.memory_space<vmem>>) attributes {dimension_semantics = [#tpu.dimension_semantics<parallel>, #tpu.dimension_semantics<parallel>], iteration_bounds = array<i64: 2, 2>, scalar_prefetch = 0 : i64, scratch_operands = 0 : i64, tpu.core_type = #tpu.core_type<tc>, window_params = [{transform_indices = @transform_0, window_bounds = array<i64: 1, 1, 6, 8, 32>}, {pipeline_mode = #tpu.pipeline_mode<synchronous>, transform_indices = @transform_1, window_bounds = array<i64: 32, 128>}, {pipeline_mode = #tpu.pipeline_mode<synchronous>, transform_indices = @transform_2, window_bounds = array<i64: 9, 128>}, {pipeline_mode = #tpu.pipeline_mode<synchronous>, transform_indices = @transform_3, window_bounds = array<i64: 128, 128>}, {pipeline_mode = #tpu.pipeline_mode<synchronous>, transform_indices = @transform_4, window_bounds = array<i64: 2, 128>}, {pipeline_mode = #tpu.pipeline_mode<synchronous>, transform_indices = @transform_5, window_bounds = array<i64: 1, 128>}, {transform_indices = @transform_6, window_bounds = array<i64: 1, 4, 8, 16>}]} {
    %c0 = arith.constant 0 : index
    %c0_0 = arith.constant 0 : index
    %c0_1 = arith.constant 0 : index
    %c0_2 = arith.constant 0 : index
    %c0_3 = arith.constant 0 : index
    %0 = vector.load %arg2[%c0, %c0_0, %c0_1, %c0_2, %c0_3] : memref<1x1x6x8x32xbf16, #tpu.memory_space<vmem>>, vector<1x1x6x8x32xbf16>
    %1 = vector.shape_cast %0 : vector<1x1x6x8x32xbf16> to vector<6x8x32xbf16>
    %2 = vector.shape_cast %1 : vector<6x8x32xbf16> to vector<48x32xbf16>
    %c0_4 = arith.constant 0 : index
    %c0_5 = arith.constant 0 : index
    %3 = vector.load %arg3[%c0_4, %c0_5] : memref<32x128xbf16, #tpu.memory_space<vmem>>, vector<32x128xbf16>
    %cst = arith.constant dense<0.000000e+00> : vector<48x128xf32>
    %4 = tpu.matmul %2, %3, %cst {dimension_numbers = #tpu.dot_dimension_numbers<[1], [0], [0], [1], [0, 0, 1, 1], [], []>} : vector<48x32xbf16>, vector<32x128xbf16>, vector<48x128xf32> -> vector<48x128xf32>
    %c0_6 = arith.constant 0 : index
    %c0_7 = arith.constant 0 : index
    %5 = vector.load %arg6[%c0_6, %c0_7] : memref<2x128xf32, #tpu.memory_space<vmem>>, vector<1x128xf32>
    %6 = vector.shape_cast %5 : vector<1x128xf32> to vector<128xf32>
    %7 = vector.shape_cast %6 : vector<128xf32> to vector<1x128xf32>
    %8 = vector.broadcast %7 : vector<1x128xf32> to vector<48x128xf32>
    %9 = arith.addf %4, %8 : vector<48x128xf32>
    %cst_8 = arith.constant 0.000000e+00 : f32
    %10 = vector.broadcast %cst_8 : f32 to vector<48x128xf32>
    %11 = arith.maximumf %9, %10 : vector<48x128xf32>
    %12 = tpu.iota {dimensions = array<i32: 0>} : vector<48x1xi32>
    %c4_i32 = arith.constant 4 : i32
    %13 = arith.muli %arg1, %c4_i32 : i32
    %c1_i32 = arith.constant 1 : i32
    %14 = arith.subi %c1_i32, %13 : i32
    %c8_i32 = arith.constant 8 : i32
    %15 = arith.muli %14, %c8_i32 : i32
    %c4_i32_9 = arith.constant 4 : i32
    %16 = arith.muli %arg1, %c4_i32_9 : i32
    %c8_i32_10 = arith.constant 8 : i32
    %17 = arith.subi %c8_i32_10, %16 : i32
    %c1_i32_11 = arith.constant 1 : i32
    %18 = arith.addi %17, %c1_i32_11 : i32
    %c8_i32_12 = arith.constant 8 : i32
    %19 = arith.muli %18, %c8_i32_12 : i32
    %20 = vector.broadcast %15 : i32 to vector<48x1xi32>
    %21 = arith.cmpi sge, %12, %20 : vector<48x1xi32>
    %22 = vector.broadcast %19 : i32 to vector<48x1xi32>
    %23 = arith.cmpi slt, %12, %22 : vector<48x1xi32>
    %24 = arith.andi %21, %23 : vector<48x1xi1>
    %cst_13 = arith.constant 0.000000e+00 : f32
    %25 = vector.shape_cast %24 : vector<48x1xi1> to vector<48x1xi1>
    %26 = vector.broadcast %25 : vector<48x1xi1> to vector<48x128xi1>
    %27 = vector.broadcast %cst_13 : f32 to vector<48x128xf32>
    %28 = arith.select %26, %11, %27 : vector<48x128xi1>, vector<48x128xf32>
    %29 = vector.shape_cast %28 : vector<48x128xf32> to vector<6x8x128xf32>
    %cst_14 = arith.constant 0.000000e+00 : f32
    %30 = vector.broadcast %cst_14 : f32 to vector<6x1x128xf32>
    %31 = vector.extract_strided_slice %29 {offsets = [0, 0, 0], sizes = [6, 7, 128], strides = [1, 1, 1]} : vector<6x8x128xf32> to vector<6x7x128xf32>
    %32 = tpu.concatenate %30, %31 in 1 : vector<6x1x128xf32>, vector<6x7x128xf32> -> vector<6x8x128xf32>
    %33 = vector.extract_strided_slice %29 {offsets = [0, 1, 0], sizes = [6, 7, 128], strides = [1, 1, 1]} : vector<6x8x128xf32> to vector<6x7x128xf32>
    %34 = tpu.concatenate %33, %30 in 1 : vector<6x7x128xf32>, vector<6x1x128xf32> -> vector<6x8x128xf32>
    %cst_15 = arith.constant 0.000000e+00 : f32
    %35 = vector.broadcast %cst_15 : f32 to vector<4x8x128xf32>
    %36 = vector.extract_strided_slice %32 {offsets = [0, 0, 0], sizes = [4, 8, 128], strides = [1, 1, 1]} : vector<6x8x128xf32> to vector<4x8x128xf32>
    %c0_16 = arith.constant 0 : index
    %c0_17 = arith.constant 0 : index
    %37 = vector.load %arg4[%c0_16, %c0_17] : memref<9x128xf32, #tpu.memory_space<vmem>>, vector<1x128xf32>
    %38 = vector.shape_cast %37 : vector<1x128xf32> to vector<128xf32>
    %39 = vector.shape_cast %38 : vector<128xf32> to vector<1x1x128xf32>
    %40 = vector.broadcast %39 : vector<1x1x128xf32> to vector<4x8x128xf32>
    %41 = arith.mulf %36, %40 : vector<4x8x128xf32>
    %42 = arith.addf %35, %41 : vector<4x8x128xf32>
    %43 = vector.extract_strided_slice %29 {offsets = [0, 0, 0], sizes = [4, 8, 128], strides = [1, 1, 1]} : vector<6x8x128xf32> to vector<4x8x128xf32>
    %c1 = arith.constant 1 : index
    %c0_18 = arith.constant 0 : index
    %44 = vector.load %arg4[%c1, %c0_18] : memref<9x128xf32, #tpu.memory_space<vmem>>, vector<1x128xf32>
    %45 = vector.shape_cast %44 : vector<1x128xf32> to vector<128xf32>
    %46 = vector.shape_cast %45 : vector<128xf32> to vector<1x1x128xf32>
    %47 = vector.broadcast %46 : vector<1x1x128xf32> to vector<4x8x128xf32>
    %48 = arith.mulf %43, %47 : vector<4x8x128xf32>
    %49 = arith.addf %42, %48 : vector<4x8x128xf32>
    %50 = vector.extract_strided_slice %34 {offsets = [0, 0, 0], sizes = [4, 8, 128], strides = [1, 1, 1]} : vector<6x8x128xf32> to vector<4x8x128xf32>
    %c2 = arith.constant 2 : index
    %c0_19 = arith.constant 0 : index
    %51 = vector.load %arg4[%c2, %c0_19] : memref<9x128xf32, #tpu.memory_space<vmem>>, vector<1x128xf32>
    %52 = vector.shape_cast %51 : vector<1x128xf32> to vector<128xf32>
    %53 = vector.shape_cast %52 : vector<128xf32> to vector<1x1x128xf32>
    %54 = vector.broadcast %53 : vector<1x1x128xf32> to vector<4x8x128xf32>
    %55 = arith.mulf %50, %54 : vector<4x8x128xf32>
    %56 = arith.addf %49, %55 : vector<4x8x128xf32>
    %57 = vector.extract_strided_slice %32 {offsets = [1, 0, 0], sizes = [4, 8, 128], strides = [1, 1, 1]} : vector<6x8x128xf32> to vector<4x8x128xf32>
    %c3 = arith.constant 3 : index
    %c0_20 = arith.constant 0 : index
    %58 = vector.load %arg4[%c3, %c0_20] : memref<9x128xf32, #tpu.memory_space<vmem>>, vector<1x128xf32>
    %59 = vector.shape_cast %58 : vector<1x128xf32> to vector<128xf32>
    %60 = vector.shape_cast %59 : vector<128xf32> to vector<1x1x128xf32>
    %61 = vector.broadcast %60 : vector<1x1x128xf32> to vector<4x8x128xf32>
    %62 = arith.mulf %57, %61 : vector<4x8x128xf32>
    %63 = arith.addf %56, %62 : vector<4x8x128xf32>
    %64 = vector.extract_strided_slice %29 {offsets = [1, 0, 0], sizes = [4, 8, 128], strides = [1, 1, 1]} : vector<6x8x128xf32> to vector<4x8x128xf32>
    %c4 = arith.constant 4 : index
    %c0_21 = arith.constant 0 : index
    %65 = vector.load %arg4[%c4, %c0_21] : memref<9x128xf32, #tpu.memory_space<vmem>>, vector<1x128xf32>
    %66 = vector.shape_cast %65 : vector<1x128xf32> to vector<128xf32>
    %67 = vector.shape_cast %66 : vector<128xf32> to vector<1x1x128xf32>
    %68 = vector.broadcast %67 : vector<1x1x128xf32> to vector<4x8x128xf32>
    %69 = arith.mulf %64, %68 : vector<4x8x128xf32>
    %70 = arith.addf %63, %69 : vector<4x8x128xf32>
    %71 = vector.extract_strided_slice %34 {offsets = [1, 0, 0], sizes = [4, 8, 128], strides = [1, 1, 1]} : vector<6x8x128xf32> to vector<4x8x128xf32>
    %c5 = arith.constant 5 : index
    %c0_22 = arith.constant 0 : index
    %72 = vector.load %arg4[%c5, %c0_22] : memref<9x128xf32, #tpu.memory_space<vmem>>, vector<1x128xf32>
    %73 = vector.shape_cast %72 : vector<1x128xf32> to vector<128xf32>
    %74 = vector.shape_cast %73 : vector<128xf32> to vector<1x1x128xf32>
    %75 = vector.broadcast %74 : vector<1x1x128xf32> to vector<4x8x128xf32>
    %76 = arith.mulf %71, %75 : vector<4x8x128xf32>
    %77 = arith.addf %70, %76 : vector<4x8x128xf32>
    %78 = vector.extract_strided_slice %32 {offsets = [2, 0, 0], sizes = [4, 8, 128], strides = [1, 1, 1]} : vector<6x8x128xf32> to vector<4x8x128xf32>
    %c6 = arith.constant 6 : index
    %c0_23 = arith.constant 0 : index
    %79 = vector.load %arg4[%c6, %c0_23] : memref<9x128xf32, #tpu.memory_space<vmem>>, vector<1x128xf32>
    %80 = vector.shape_cast %79 : vector<1x128xf32> to vector<128xf32>
    %81 = vector.shape_cast %80 : vector<128xf32> to vector<1x1x128xf32>
    %82 = vector.broadcast %81 : vector<1x1x128xf32> to vector<4x8x128xf32>
    %83 = arith.mulf %78, %82 : vector<4x8x128xf32>
    %84 = arith.addf %77, %83 : vector<4x8x128xf32>
    %85 = vector.extract_strided_slice %29 {offsets = [2, 0, 0], sizes = [4, 8, 128], strides = [1, 1, 1]} : vector<6x8x128xf32> to vector<4x8x128xf32>
    %c7 = arith.constant 7 : index
    %c0_24 = arith.constant 0 : index
    %86 = vector.load %arg4[%c7, %c0_24] : memref<9x128xf32, #tpu.memory_space<vmem>>, vector<1x128xf32>
    %87 = vector.shape_cast %86 : vector<1x128xf32> to vector<128xf32>
    %88 = vector.shape_cast %87 : vector<128xf32> to vector<1x1x128xf32>
    %89 = vector.broadcast %88 : vector<1x1x128xf32> to vector<4x8x128xf32>
    %90 = arith.mulf %85, %89 : vector<4x8x128xf32>
    %91 = arith.addf %84, %90 : vector<4x8x128xf32>
    %92 = vector.extract_strided_slice %34 {offsets = [2, 0, 0], sizes = [4, 8, 128], strides = [1, 1, 1]} : vector<6x8x128xf32> to vector<4x8x128xf32>
    %c8 = arith.constant 8 : index
    %c0_25 = arith.constant 0 : index
    %93 = vector.load %arg4[%c8, %c0_25] : memref<9x128xf32, #tpu.memory_space<vmem>>, vector<1x128xf32>
    %94 = vector.shape_cast %93 : vector<1x128xf32> to vector<128xf32>
    %95 = vector.shape_cast %94 : vector<128xf32> to vector<1x1x128xf32>
    %96 = vector.broadcast %95 : vector<1x1x128xf32> to vector<4x8x128xf32>
    %97 = arith.mulf %92, %96 : vector<4x8x128xf32>
    %98 = arith.addf %91, %97 : vector<4x8x128xf32>
    %c1_26 = arith.constant 1 : index
    %c0_27 = arith.constant 0 : index
    %99 = vector.load %arg6[%c1_26, %c0_27] : memref<2x128xf32, #tpu.memory_space<vmem>>, vector<1x128xf32>
    %100 = vector.shape_cast %99 : vector<1x128xf32> to vector<128xf32>
    %101 = vector.shape_cast %100 : vector<128xf32> to vector<1x1x128xf32>
    %102 = vector.broadcast %101 : vector<1x1x128xf32> to vector<4x8x128xf32>
    %103 = arith.addf %98, %102 : vector<4x8x128xf32>
    %cst_28 = arith.constant 0.000000e+00 : f32
    %104 = vector.broadcast %cst_28 : f32 to vector<4x8x128xf32>
    %105 = arith.maximumf %103, %104 : vector<4x8x128xf32>
    %106 = vector.shape_cast %105 : vector<4x8x128xf32> to vector<32x128xf32>
    %107 = arith.truncf %106 : vector<32x128xf32> to vector<32x128xbf16>
    %c0_29 = arith.constant 0 : index
    %c0_30 = arith.constant 0 : index
    %108 = vector.load %arg5[%c0_29, %c0_30] : memref<128x128xbf16, #tpu.memory_space<vmem>>, vector<128x128xbf16>
    %cst_31 = arith.constant dense<0.000000e+00> : vector<32x128xf32>
    %109 = tpu.matmul %107, %108, %cst_31 {dimension_numbers = #tpu.dot_dimension_numbers<[1], [0], [0], [1], [0, 0, 1, 1], [], []>} : vector<32x128xbf16>, vector<128x128xbf16>, vector<32x128xf32> -> vector<32x128xf32>
    %c0_32 = arith.constant 0 : index
    %c0_33 = arith.constant 0 : index
    %110 = vector.load %arg7[%c0_32, %c0_33] : memref<1x128xf32, #tpu.memory_space<vmem>>, vector<1x128xf32>
    %111 = vector.shape_cast %110 : vector<1x128xf32> to vector<128xf32>
    %112 = vector.shape_cast %111 : vector<128xf32> to vector<1x128xf32>
    %113 = vector.broadcast %112 : vector<1x128xf32> to vector<32x128xf32>
    %114 = arith.addf %109, %113 : vector<32x128xf32>
    %cst_34 = arith.constant 0.000000e+00 : f32
    %115 = vector.broadcast %cst_34 : f32 to vector<32x128xf32>
    %116 = arith.maximumf %114, %115 : vector<32x128xf32>
    %117 = vector.shape_cast %116 : vector<32x128xf32> to vector<4x8x128xf32>
    %118 = vector.extract_strided_slice %117 {offsets = [0, 0, 0], sizes = [4, 8, 16], strides = [1, 1, 1]} : vector<4x8x128xf32> to vector<4x8x16xf32>
    %119 = arith.truncf %118 : vector<4x8x16xf32> to vector<4x8x16xbf16>
    %c0_35 = arith.constant 0 : index
    %c0_36 = arith.constant 0 : index
    %c0_37 = arith.constant 0 : index
    %c0_38 = arith.constant 0 : index
    %120 = vector.load %arg8[%c0_35, %c0_36, %c0_37, %c0_38] : memref<1x4x8x16xbf16, #tpu.memory_space<vmem>>, vector<1x4x8x16xbf16>
    %121 = vector.shape_cast %120 : vector<1x4x8x16xbf16> to vector<4x8x16xbf16>
    %122 = vector.shape_cast %119 : vector<4x8x16xbf16> to vector<1x4x8x16xbf16>
    tpu.vector_store %arg8[%c0_35, %c0_36, %c0_37, %c0_38], %122 {strides = array<i32>} : memref<1x4x8x16xbf16, #tpu.memory_space<vmem>>, vector<1x4x8x16xbf16>,
    return
  }
  func.func @transform_0(%arg0: i32, %arg1: i32) -> (i32, i32, i32, i32, i32) {
    %c0_i32 = arith.constant 0 : i32
    %c0_i32_0 = arith.constant 0 : i32
    %c0_i32_1 = arith.constant 0 : i32
    %c0_i32_2 = arith.constant 0 : i32
    return %arg0, %arg1, %c0_i32, %c0_i32_0, %c0_i32_1 : i32, i32, i32, i32, i32
  }
  func.func @transform_1(%arg0: i32, %arg1: i32) -> (i32, i32) {
    %c0_i32 = arith.constant 0 : i32
    %c0_i32_0 = arith.constant 0 : i32
    %c0_i32_1 = arith.constant 0 : i32
    return %c0_i32, %c0_i32_0 : i32, i32
  }
  func.func @transform_2(%arg0: i32, %arg1: i32) -> (i32, i32) {
    %c0_i32 = arith.constant 0 : i32
    %c0_i32_0 = arith.constant 0 : i32
    %c0_i32_1 = arith.constant 0 : i32
    return %c0_i32, %c0_i32_0 : i32, i32
  }
  func.func @transform_3(%arg0: i32, %arg1: i32) -> (i32, i32) {
    %c0_i32 = arith.constant 0 : i32
    %c0_i32_0 = arith.constant 0 : i32
    %c0_i32_1 = arith.constant 0 : i32
    return %c0_i32, %c0_i32_0 : i32, i32
  }
  func.func @transform_4(%arg0: i32, %arg1: i32) -> (i32, i32) {
    %c0_i32 = arith.constant 0 : i32
    %c0_i32_0 = arith.constant 0 : i32
    %c0_i32_1 = arith.constant 0 : i32
    return %c0_i32, %c0_i32_0 : i32, i32
  }
  func.func @transform_5(%arg0: i32, %arg1: i32) -> (i32, i32) {
    %c0_i32 = arith.constant 0 : i32
    %c0_i32_0 = arith.constant 0 : i32
    %c0_i32_1 = arith.constant 0 : i32
    return %c0_i32, %c0_i32_0 : i32, i32
  }
  func.func @transform_6(%arg0: i32, %arg1: i32) -> (i32, i32, i32, i32) {
    %c0_i32 = arith.constant 0 : i32
    %c0_i32_0 = arith.constant 0 : i32
    %c0_i32_1 = arith.constant 0 : i32
    return %arg0, %arg1, %c0_i32, %c0_i32_0 : i32, i32, i32, i32
  }
}

</mosaic_0001>

<llo_original>
// kernel: mnas_init_block.1
$region0: #{mnas_init_block.1}
  #allocation0 [shape = 'u32[]', space=smem, size = 0x4, offset = 0x4, fixed_abs, tag = 'smem constant byte address 0x4 - core index']
  #allocation1 [shape = 'u32[144,128]{1,0:T(1,128)}', space=vmem, size = 0x12000, scoped, tag = 'internal scratch']
  %s0 = inlined_call_operand.vmem [shape: bf16[2,2,6,8,32], index: 0, kind: input, shape index: {}]
  %s1 = inlined_call_operand.vmem [shape: bf16[32,128], index: 1, kind: input, shape index: {}]
  %s2 = inlined_call_operand.vmem [shape: f32[9,128], index: 2, kind: input, shape index: {}]
  %s3 = inlined_call_operand.vmem [shape: bf16[128,128], index: 3, kind: input, shape index: {}]
  %s4 = inlined_call_operand.vmem [shape: f32[2,128], index: 4, kind: input, shape index: {}]
  %s5 = inlined_call_operand.vmem [shape: f32[1,128], index: 5, kind: input, shape index: {}]
  %s6 = inlined_call_operand.vmem [shape: bf16[2,8,8,16], index: 6, kind: output, shape index: {}]
  %s7 = sld [smem:[#allocation0]]
  $region57: #{mnas_init_block.1} parent=0
    _
  %s9 = ssub.s32 1, %s7
  %s10 = scalar_select 0, %s9, %s7
  loop: start=0, step=1, limit=6
  $region2: #{mnas_init_block.1} parent=0 // loop_pre_header
    _
  $region3: #{mnas_init_block.1} parent=0 // loop_header
    %s12 = sphi 0, %s16
    %p13 = scmp.ge.s32.totalorder %s12, 6
    %s19 = sphi 0, %s31
    %s20 = sphi 0, %s27
    %s21 = sphi 0, %s19
    %s22 = sphi 0, %s20
    %s23 = sphi 0, %s21
    %s24 = sphi 0, %s22
    %s36 = sphi 0, %s38
    %s39 = sphi 0, %s36
    %s40 = sphi 0, %s39
    %s56 = sphi 0, %s40
    %s60 = sphi 0, %s60
    %s62 = sphi 0, %s60
    %s63 = sphi 0, %s62
    %s77 = sphi 0, %s63
    %s81 = sphi 0, %s81
    %s83 = sphi 0, %s81
    %s84 = sphi 0, %s83
    %s98 = sphi 0, %s84
    %s102 = sphi 0, %s102
    %s104 = sphi 0, %s102
    %s105 = sphi 0, %s104
    %s119 = sphi 0, %s105
    %s123 = sphi 0, %s123
    %s125 = sphi 0, %s123
    %s126 = sphi 0, %s125
    %s140 = sphi 0, %s126
    %s144 = sphi 0, %s144
    %s146 = sphi 0, %s144
    %s147 = sphi 0, %s146
    %s161 = sphi 0, %s147
    %s169 = sphi 0, %s171
    %s172 = sphi 0, %s169
    %s173 = sphi 0, %s172
    %s189 = sphi 0, %s173
  $region4: #{mnas_init_block.1} parent=0 // loop_header_branch
    %15 = sbr.rel (%p13) target = $region8
  $region5: #{mnas_init_block.1} parent=0 // loop_body
    %s17 = ssub.s32 %s12, 1
    %s18 = ssub.s32 %s12, 2
    %s25 = sadd.s32 1, %s20
    %p26 = scmp.ge.s32.totalorder %s25, 2
    %s27 = scalar_select %p26, 0, %s25
    %s28 = sadd.s32 1, %s19
    %s29 = scalar_select %p26, %s28, %s19
    %p30 = scmp.ge.s32.totalorder %s29, 2
    %s31 = scalar_select %p30, 0, %s29
    %s32 = ssub.s32 %s19, %s31
    %s33 = ssub.s32 %s20, %s27
    %s34 = sor.u32 %s32, %s33
    %p35 = scmp.eq.s32.totalorder %s34, 0
    %s37 = sadd.s32 %s36, 1
    %s38 = scalar_select %p35, %s36, %s37
    %p41 = pneg %p35
    %p42 = scmp.eq.s32.totalorder %s12, 3
    %p43 = por %p41, %p42
    %p44 = scmp.ne.s32.totalorder %s36, %s39
    %p45 = scmp.eq.s32.totalorder %s12, 0
    %p46 = por %p44, %p45
    %p47 = scmp.ne.s32.totalorder %s36, %s39
    %p48 = scmp.eq.s32.totalorder %s17, 3
    %p49 = por %p47, %p48
    %p50 = scmp.ne.s32.totalorder %s39, %s40
    %p51 = scmp.eq.s32.totalorder %s17, 0
    %p52 = por %p50, %p51
    %p53 = scmp.ne.s32.totalorder %s39, %s40
    %p54 = scmp.eq.s32.totalorder %s18, 3
    %p55 = por %p53, %p54
    %p57 = scmp.ne.s32.totalorder %s40, %s56
    %p58 = scmp.eq.s32.totalorder %s18, 0
    %p59 = por %p57, %p58
    %s61 = sadd.s32 %s60, 1
    %p64 = scmp.eq.s32.totalorder %s12, 3
    %p65 = scmp.ne.s32.totalorder %s60, %s62
    %p66 = scmp.eq.s32.totalorder %s12, 0
    %p67 = por %p65, %p66
    %p68 = scmp.ne.s32.totalorder %s60, %s62
    %p69 = scmp.eq.s32.totalorder %s17, 3
    %p70 = por %p68, %p69
    %p71 = scmp.ne.s32.totalorder %s62, %s63
    %p72 = scmp.eq.s32.totalorder %s17, 0
    %p73 = por %p71, %p72
    %p74 = scmp.ne.s32.totalorder %s62, %s63
    %p75 = scmp.eq.s32.totalorder %s18, 3
    %p76 = por %p74, %p75
    %p78 = scmp.ne.s32.totalorder %s63, %s77
    %p79 = scmp.eq.s32.totalorder %s18, 0
    %p80 = por %p78, %p79
    %s82 = sadd.s32 %s81, 1
    %p85 = scmp.eq.s32.totalorder %s12, 3
    %p86 = scmp.ne.s32.totalorder %s81, %s83
    %p87 = scmp.eq.s32.totalorder %s12, 0
    %p88 = por %p86, %p87
    %p89 = scmp.ne.s32.totalorder %s81, %s83
    %p90 = scmp.eq.s32.totalorder %s17, 3
    %p91 = por %p89, %p90
    %p92 = scmp.ne.s32.totalorder %s83, %s84
    %p93 = scmp.eq.s32.totalorder %s17, 0
    %p94 = por %p92, %p93
    %p95 = scmp.ne.s32.totalorder %s83, %s84
    %p96 = scmp.eq.s32.totalorder %s18, 3
    %p97 = por %p95, %p96
    %p99 = scmp.ne.s32.totalorder %s84, %s98
    %p100 = scmp.eq.s32.totalorder %s18, 0
    %p101 = por %p99, %p100
    %s103 = sadd.s32 %s102, 1
    %p106 = scmp.eq.s32.totalorder %s12, 3
    %p107 = scmp.ne.s32.totalorder %s102, %s104
    %p108 = scmp.eq.s32.totalorder %s12, 0
    %p109 = por %p107, %p108
    %p110 = scmp.ne.s32.totalorder %s102, %s104
    %p111 = scmp.eq.s32.totalorder %s17, 3
    %p112 = por %p110, %p111
    %p113 = scmp.ne.s32.totalorder %s104, %s105
    %p114 = scmp.eq.s32.totalorder %s17, 0
    %p115 = por %p113, %p114
    %p116 = scmp.ne.s32.totalorder %s104, %s105
    %p117 = scmp.eq.s32.totalorder %s18, 3
    %p118 = por %p116, %p117
    %p120 = scmp.ne.s32.totalorder %s105, %s119
    %p121 = scmp.eq.s32.totalorder %s18, 0
    %p122 = por %p120, %p121
    %s124 = sadd.s32 %s123, 1
    %p127 = scmp.eq.s32.totalorder %s12, 3
    %p128 = scmp.ne.s32.totalorder %s123, %s125
    %p129 = scmp.eq.s32.totalorder %s12, 0
    %p130 = por %p128, %p129
    %p131 = scmp.ne.s32.totalorder %s123, %s125
    %p132 = scmp.eq.s32.totalorder %s17, 3
    %p133 = por %p131, %p132
    %p134 = scmp.ne.s32.totalorder %s125, %s126
    %p135 = scmp.eq.s32.totalorder %s17, 0
    %p136 = por %p134, %p135
    %p137 = scmp.ne.s32.totalorder %s125, %s126
    %p138 = scmp.eq.s32.totalorder %s18, 3
    %p139 = por %p137, %p138
    %p141 = scmp.ne.s32.totalorder %s126, %s140
    %p142 = scmp.eq.s32.totalorder %s18, 0
    %p143 = por %p141, %p142
    %s145 = sadd.s32 %s144, 1
    %p148 = scmp.eq.s32.totalorder %s12, 3
    %p149 = scmp.ne.s32.totalorder %s144, %s146
    %p150 = scmp.eq.s32.totalorder %s12, 0
    %p151 = por %p149, %p150
    %p152 = scmp.ne.s32.totalorder %s144, %s146
    %p153 = scmp.eq.s32.totalorder %s17, 3
    %p154 = por %p152, %p153
    %p155 = scmp.ne.s32.totalorder %s146, %s147
    %p156 = scmp.eq.s32.totalorder %s17, 0
    %p157 = por %p155, %p156
    %p158 = scmp.ne.s32.totalorder %s146, %s147
    %p159 = scmp.eq.s32.totalorder %s18, 3
    %p160 = por %p158, %p159
    %p162 = scmp.ne.s32.totalorder %s147, %s161
    %p163 = scmp.eq.s32.totalorder %s18, 0
    %p164 = por %p162, %p163
    %s165 = ssub.s32 %s19, %s31
    %s166 = ssub.s32 %s20, %s27
    %s167 = sor.u32 %s165, %s166
    %p168 = scmp.eq.s32.totalorder %s167, 0
    %s170 = sadd.s32 %s169, 1
    %s171 = scalar_select %p168, %s169, %s170
    %p174 = pneg %p168
    %p175 = scmp.eq.s32.totalorder %s12, 3
    %p176 = por %p174, %p175
    %p177 = scmp.ne.s32.totalorder %s169, %s172
    %p178 = scmp.eq.s32.totalorder %s12, 0
    %p179 = por %p177, %p178
    %p180 = scmp.ne.s32.totalorder %s169, %s172
    %p181 = scmp.eq.s32.totalorder %s17, 3
    %p182 = por %p180, %p181
    %p183 = scmp.ne.s32.totalorder %s172, %s173
    %p184 = scmp.eq.s32.totalorder %s17, 0
    %p185 = por %p183, %p184
    %p186 = scmp.ne.s32.totalorder %s172, %s173
    %p187 = scmp.eq.s32.totalorder %s18, 3
    %p188 = por %p186, %p187
    %p190 = scmp.ne.s32.totalorder %s173, %s189
    %p191 = scmp.eq.s32.totalorder %s18, 0
    %p192 = por %p190, %p191
    %p193 = scmp.le.s32.totalorder 1, %s12
    %p194 = scmp.lt.s32.totalorder %s12, 5
    %p195 = pnand %p193, %p194
    %p196 = pneg %p195
    // Predicated region
    $region9: #{mnas_init_block.1} parent=5 // pred_check
      _
    $region10: #{mnas_init_block.1} parent=5 // pred_check_branch
      %198 = sbr.rel (%p195) target = $region12
    $region11: #{mnas_init_block.1} parent=5 // pred_region
      %s199 = ssub.s32 %s12, 1
      // Predicated region
      $region13: #{mnas_init_block.1} parent=11 // pred_check
        %p200 = pneg %p73
      $region14: #{mnas_init_block.1} parent=11 // pred_check_branch
        %202 = sbr.rel (%p200) target = $region16
      $region15: #{mnas_init_block.1} parent=11 // pred_region
        _
      $region16: #{mnas_init_block.1} parent=11 // pred_fallthru
        _
      // Predicated region
      $region17: #{mnas_init_block.1} parent=11 // pred_check
        %p203 = pneg %p94
      $region18: #{mnas_init_block.1} parent=11 // pred_check_branch
        %205 = sbr.rel (%p203) target = $region20
      $region19: #{mnas_init_block.1} parent=11 // pred_region
        _
      $region20: #{mnas_init_block.1} parent=11 // pred_fallthru
        _
      // Predicated region
      $region21: #{mnas_init_block.1} parent=11 // pred_check
        %p206 = pneg %p115
      $region22: #{mnas_init_block.1} parent=11 // pred_check_branch
        %208 = sbr.rel (%p206) target = $region24
      $region23: #{mnas_init_block.1} parent=11 // pred_region
        _
      $region24: #{mnas_init_block.1} parent=11 // pred_fallthru
        _
      // Predicated region
      $region25: #{mnas_init_block.1} parent=11 // pred_check
        %p209 = pneg %p136
      $region26: #{mnas_init_block.1} parent=11 // pred_check_branch
        %211 = sbr.rel (%p209) target = $region28
      $region27: #{mnas_init_block.1} parent=11 // pred_region
        _
      $region28: #{mnas_init_block.1} parent=11 // pred_fallthru
        _
      // Predicated region
      $region29: #{mnas_init_block.1} parent=11 // pred_check
        %p212 = pneg %p157
      $region30: #{mnas_init_block.1} parent=11 // pred_check_branch
        %214 = sbr.rel (%p212) target = $region32
      $region31: #{mnas_init_block.1} parent=11 // pred_region
        _
      $region32: #{mnas_init_block.1} parent=11 // pred_fallthru
        _
    $region12: #{mnas_init_block.1} parent=5 // pred_fallthru
      _
    %p215 = scmp.lt.s32.totalorder %s12, 4
    // Predicated region
    $region33: #{mnas_init_block.1} parent=5 // pred_check
      %p216 = pneg %p215
    $region34: #{mnas_init_block.1} parent=5 // pred_check_branch
      %218 = sbr.rel (%p216) target = $region36
    $region35: #{mnas_init_block.1} parent=5 // pred_region
      // Predicated region
      $region37: #{mnas_init_block.1} parent=35 // pred_check
        %p219 = pneg %p46
      $region38: #{mnas_init_block.1} parent=35 // pred_check_branch
        %221 = sbr.rel (%p219) target = $region40
      $region39: #{mnas_init_block.1} parent=35 // pred_region
        %p222 = scmp.lt.s32.totalorder %s19, 1
        %s223 = scalar_select %p222, %s19, 1
        %p224 = scmp.lt.s32.totalorder %s20, 1
        %s225 = scalar_select %p224, %s20, 1
        %s226 = smul.addr %s225, 6
        %s227 = smul.addr %s223, 12
        %s228 = sadd.s32 %s226, %s227
        %s229 = smul.addr %s228, 4
        %s230 = scalar_lea.vmem %s0, %s229
      $region40: #{mnas_init_block.1} parent=35 // pred_fallthru
        _
    $region36: #{mnas_init_block.1} parent=5 // pred_fallthru
      _
    %p231 = scmp.le.s32.totalorder 1, %s12
    %p232 = scmp.lt.s32.totalorder %s12, 5
    %p233 = pnand %p231, %p232
    %p234 = pneg %p233
    // Predicated region
    $region41: #{mnas_init_block.1} parent=5 // pred_check
      _
    $region42: #{mnas_init_block.1} parent=5 // pred_check_branch
      %236 = sbr.rel (%p233) target = $region44
    $region43: #{mnas_init_block.1} parent=5 // pred_region
      %s237 = ssub.s32 %s12, 1
      %p238 = scmp.lt.s32.totalorder %s21, 1
      %s239 = scalar_select %p238, %s21, 1
      %p240 = scmp.lt.s32.totalorder %s22, 1
      %s241 = scalar_select %p240, %s22, 1
      %s242 = smul.addr %s241, 6
      %s243 = smul.addr %s239, 12
      %s244 = sadd.s32 %s242, %s243
      %s245 = smul.addr %s244, 4
      %s246 = scalar_lea.vmem %s0, %s245
      %p247 = pneg %p52
      %p248 = pneg %p49
      %p249 = pneg %p73
      %p250 = pneg %p70
      %p251 = pneg %p94
      %p252 = pneg %p91
      %p253 = pneg %p115
      %p254 = pneg %p112
      %p255 = pneg %p136
      %p256 = pneg %p133
      %p257 = pneg %p157
      %p258 = pneg %p154
      %p259 = pneg %p185
      %p260 = pneg %p182
      %s261 = smul.u32 4, %s22
      %p262 = scmp.lt.s32.totalorder %s21, 1
      %s263 = scalar_select %p262, %s21, 1
      %p264 = scmp.lt.s32.totalorder %s261, 7
      %s265 = scalar_select %p264, %s261, 7
      %s266 = smul.addr %s263, 8
      %s267 = sadd.s32 %s265, %s266
      %s268 = smul.addr %s267, 4
      %s269 = scalar_lea.vmem %s6, %s268
      %p270 = scmp.lt.s32.totalorder %s21, 1
      %s271 = scalar_select %p270, %s21, 1
      %p272 = scmp.lt.s32.totalorder %s22, 1
      %s273 = scalar_select %p272, %s22, 1
      %s274 = smul.addr %s273, 6
      %s275 = smul.addr %s271, 12
      %s276 = sadd.s32 %s274, %s275
      %s277 = smul.addr %s276, 4
      %s278 = scalar_lea.vmem %s0, %s277
      %s279 = smul.u32 4, %s22
      %p280 = scmp.lt.s32.totalorder %s21, 1
      %s281 = scalar_select %p280, %s21, 1
      %p282 = scmp.lt.s32.totalorder %s279, 7
      %s283 = scalar_select %p282, %s279, 7
      %s284 = smul.addr %s281, 8
      %s285 = sadd.s32 %s283, %s284
      %s286 = smul.addr %s285, 4
      %s287 = scalar_lea.vmem %s6, %s286
      %s288 = smul.u32 4, %s22
      %v290 = vld [vmem:[%s278] sm:$0xf]
      %v291 = vld [vmem:[%s278 + $0x4] sm:$0xf]
      %v292 = vld [vmem:[%s278 + $0x8] sm:$0xf]
      %v293 = vld [vmem:[%s278 + $0xc] sm:$0xf]
      %v294 = vld [vmem:[%s278 + $0x10] sm:$0xf]
      %v295 = vld [vmem:[%s278 + $0x14] sm:$0xf]
      %v296 = vld [vmem:[%s1] sm:$0xf]
      %v297 = vld [vmem:[%s1 + $0x4] sm:$0xf]
      %v298 = vld [vmem:[%s1 + $0x8] sm:$0xf]
      %v299 = vld [vmem:[%s1 + $0xc] sm:$0xf]
      %v300 = vld [vmem:[%s4] sm:$0x1]
      %v301 = vlaneseq
      %v302 = vshrl.u32 %v301, 7
      %v303 = vsub.s32 0, %v302
      %v304 = vrot.slane %v300, %v303
      %v311 = vunpack.c.l.b16 %v290
      %v312 = vunpack.c.l.b16 %v291
      %v313 = vunpack.c.l.b16 %v292
      %v314 = vunpack.c.l.b16 %v293
      %v315 = vunpack.c.l.b16 %v294
      %v316 = vunpack.c.l.b16 %v295
      %v317 = vpack.c.b16 %v312, %v311
      %v318 = vpack.c.b16 %v314, %v313
      %v319 = vpack.c.b16 %v316, %v315
      %v324 = vunpack.c.l.b16 %v296
      %v325 = vunpack.c.l.b16 %v297
      %v326 = vunpack.c.l.b16 %v298
      %v327 = vunpack.c.l.b16 %v299
      %v328 = vpack.c.b16 %v325, %v324
      %v329 = vpack.c.b16 %v327, %v326
      %vm332 = vcmask 261120
      %v334 = vsel %vm332, %v317, 0
      %v337 = vsel %vm332, %v318, 0
      %v340 = vsel %vm332, %v319, 0
      %342 = vmatprep.subr.bf16.mxu0 0
      %343 = vmatpush1.bf16.msra.mxu0 %v328
      %344 = vmatprep.subr.bf16.mxu0 0
      %345 = vmatpush1.bf16.msra.mxu0 %v329
      %346 = vmatprep.subr.bf16.mxu0 0
      %347 = vmatpush1.bf16.msra.mxu0 0
      %348 = vmatprep.subr.bf16.mxu0 0
      %349 = vmatpush1.bf16.msra.mxu0 0
      %350 = vmatprep.subr.bf16.mxu0 0
      %351 = vmatpush1.bf16.msra.mxu0 0
      %352 = vmatprep.subr.bf16.mxu0 0
      %353 = vmatpush1.bf16.msra.mxu0 0
      %354 = vmatprep.subr.bf16.mxu0 0
      %355 = vmatpush1.bf16.msra.mxu0 0
      %356 = vmatprep.subr.bf16.mxu0 0
      %357 = vmatpush1.bf16.msra.mxu0 0
      %358 = vmatprep.subr.bf16.mxu0 0
      %359 = vmatpush1.bf16.msra.mxu0 0
      %360 = vmatprep.subr.bf16.mxu0 0
      %361 = vmatpush1.bf16.msra.mxu0 0
      %362 = vmatprep.subr.bf16.mxu0 0
      %363 = vmatpush1.bf16.msra.mxu0 0
      %364 = vmatprep.subr.bf16.mxu0 0
      %365 = vmatpush1.bf16.msra.mxu0 0
      %366 = vmatprep.subr.bf16.mxu0 0
      %367 = vmatpush1.bf16.msra.mxu0 0
      %368 = vmatprep.subr.bf16.mxu0 0
      %369 = vmatpush1.bf16.msra.mxu0 0
      %370 = vmatprep.subr.bf16.mxu0 0
      %371 = vmatpush1.bf16.msra.mxu0 0
      %372 = vmatprep.subr.bf16.mxu0 0
      %373 = vmatpush1.bf16.msra.mxu0 0
      %374 = vmatprep.mubr.bf16.mxu0 0
      %375 = vmatmul.mubr.bf16.gmra.mrb[0].mxu0 %v334
      %v376 = vpop.f32.mrb[0].mxu0
      %v377 = vadd.f32 %v304, %v376
      %v378 = vpop.f32.mrb[0].mxu0
      %v379 = vpop.f32.mrb[0].mxu0
      %v380 = vadd.f32 %v304, %v379
      %v381 = vpop.f32.mrb[0].mxu0
      %382 = vmatprep.mubr.bf16.mxu0 0
      %383 = vmatmul.mubr.bf16.gmra.mrb[0].mxu0 %v337
      %v384 = vpop.f32.mrb[0].mxu0
      %v385 = vadd.f32 %v304, %v384
      %v386 = vpop.f32.mrb[0].mxu0
      %v387 = vpop.f32.mrb[0].mxu0
      %v388 = vadd.f32 %v304, %v387
      %v389 = vpop.f32.mrb[0].mxu0
      %390 = vmatprep.mubr.bf16.mxu0 0
      %391 = vmatmul.mubr.bf16.gmra.mrb[0].mxu0 %v340
      %v392 = vpop.f32.mrb[0].mxu0
      %v393 = vadd.f32 %v304, %v392
      %v394 = vpop.f32.mrb[0].mxu0
      %v395 = vpop.f32.mrb[0].mxu0
      %v396 = vadd.f32 %v304, %v395
      %v397 = vpop.f32.mrb[0].mxu0
      %398 = vdwg.mxu0
      %v399 = vmax.f32 %v377, 0.0
      %v400 = vmax.f32 %v380, 0.0
      %v401 = vmax.f32 %v385, 0.0
      %v402 = vmax.f32 %v388, 0.0
      %v403 = vmax.f32 %v393, 0.0
      %v404 = vmax.f32 %v396, 0.0
      %v405 = vlaneseq
      %v406 = vshrl.u32 %v405, 7
      %v407 = vadd.s32 %v406, 8
      %v408 = vadd.s32 %v406, 16
      %v409 = vadd.s32 %v406, 24
      %v410 = vadd.s32 %v406, 32
      %v411 = vadd.s32 %v406, 40
      %s412 = smul.u32 %s22, 4
      %s413 = ssub.s32 1, %s412
      %s414 = smul.u32 %s413, 8
      %s415 = ssub.s32 9, %s412
      %s416 = smul.u32 %s415, 8
      %v417 = vstv %s414
      %vm418 = vcmp.ge.s32.totalorder %v406, %v417
      %vm419 = vcmp.ge.s32.totalorder %v407, %v417
      %vm420 = vcmp.ge.s32.totalorder %v408, %v417
      %vm421 = vcmp.ge.s32.totalorder %v409, %v417
      %vm422 = vcmp.ge.s32.totalorder %v410, %v417
      %vm423 = vcmp.ge.s32.totalorder %v411, %v417
      %v424 = vstv %s416
      %vm425 = vcmp.lt.s32.totalorder %v406, %v424
      %vm426 = vcmp.lt.s32.totalorder %v407, %v424
      %vm427 = vcmp.lt.s32.totalorder %v408, %v424
      %vm428 = vcmp.lt.s32.totalorder %v409, %v424
      %vm429 = vcmp.lt.s32.totalorder %v410, %v424
      %vm430 = vcmp.lt.s32.totalorder %v411, %v424
      %vm431 = vmand %vm418, %vm425
      %vm432 = vmand %vm419, %vm426
      %vm433 = vmand %vm420, %vm427
      %vm434 = vmand %vm421, %vm428
      %vm435 = vmand %vm422, %vm429
      %vm436 = vmand %vm423, %vm430
      %v437 = vsel %vm431, 1, 0
      %v438 = vsel %vm432, 1, 0
      %v439 = vsel %vm433, 1, 0
      %v440 = vsel %vm434, 1, 0
      %v441 = vsel %vm435, 1, 0
      %v442 = vsel %vm436, 1, 0
      %vm443 = vcmp.eq.s32.totalorder %v437, 1
      %vm444 = vcmp.eq.s32.totalorder %v438, 1
      %vm445 = vcmp.eq.s32.totalorder %v439, 1
      %vm446 = vcmp.eq.s32.totalorder %v440, 1
      %vm447 = vcmp.eq.s32.totalorder %v441, 1
      %vm448 = vcmp.eq.s32.totalorder %v442, 1
      %v449 = vsel %vm443, %v399, 0.0
      %v450 = vsel %vm444, %v400, 0.0
      %v451 = vsel %vm445, %v401, 0.0
      %v452 = vsel %vm446, %v402, 0.0
      %v453 = vsel %vm447, %v403, 0.0
      %v454 = vsel %vm448, %v404, 0.0
      %v461 = vrot.slane %v449, 7
      %v462 = vrot.slane %v450, 7
      %v463 = vrot.slane %v451, 7
      %v464 = vrot.slane %v452, 7
      %v465 = vrot.slane %v453, 7
      %v466 = vrot.slane %v454, 7
      %vm473 = vcmask 1040384
      %v474 = vsel %vm473, 0.0, %v461
      %v475 = vsel %vm473, 0.0, %v462
      %v476 = vsel %vm473, 0.0, %v463
      %v477 = vsel %vm473, 0.0, %v464
      %v478 = vsel %vm473, 0.0, %v465
      %v479 = vsel %vm473, 0.0, %v466
      %v480 = vrot.slane %v449, 1
      %v481 = vrot.slane %v450, 1
      %v482 = vrot.slane %v451, 1
      %v483 = vrot.slane %v452, 1
      %v484 = vrot.slane %v453, 1
      %v485 = vrot.slane %v454, 1
      %vm492 = vcmask 1046528
      %v493 = vsel %vm492, %v480, 0.0
      %v494 = vsel %vm492, %v481, 0.0
      %v495 = vsel %vm492, %v482, 0.0
      %v496 = vsel %vm492, %v483, 0.0
      %v497 = vsel %vm492, %v484, 0.0
      %v498 = vsel %vm492, %v485, 0.0
      %v499 = vld [vmem:[%s2] sm:$0x1]
      %v500 = vlaneseq
      %v501 = vshrl.u32 %v500, 7
      %v502 = vsub.s32 0, %v501
      %v503 = vrot.slane %v499, %v502
      %v504 = vmul.f32 %v474, %v503
      %v505 = vmul.f32 %v475, %v503
      %v506 = vmul.f32 %v476, %v503
      %v507 = vmul.f32 %v477, %v503
      %v508 = vadd.f32 %v504, 0.0
      %v509 = vadd.f32 %v505, 0.0
      %v510 = vadd.f32 %v506, 0.0
      %v511 = vadd.f32 %v507, 0.0
      %v512 = vld [vmem:[%s2 + $0x1] sm:$0x1]
      %v513 = vlaneseq
      %v514 = vshrl.u32 %v513, 7
      %v515 = vsub.s32 0, %v514
      %v516 = vrot.slane %v512, %v515
      %v517 = vmul.f32 %v449, %v516
      %v518 = vmul.f32 %v450, %v516
      %v519 = vmul.f32 %v451, %v516
      %v520 = vmul.f32 %v452, %v516
      %v521 = vadd.f32 %v508, %v517
      %v522 = vadd.f32 %v509, %v518
      %v523 = vadd.f32 %v510, %v519
      %v524 = vadd.f32 %v511, %v520
      %v525 = vld [vmem:[%s2 + $0x2] sm:$0x1]
      %v526 = vlaneseq
      %v527 = vshrl.u32 %v526, 7
      %v528 = vsub.s32 0, %v527
      %v529 = vrot.slane %v525, %v528
      %v530 = vmul.f32 %v493, %v529
      %v531 = vmul.f32 %v494, %v529
      %v532 = vmul.f32 %v495, %v529
      %v533 = vmul.f32 %v496, %v529
      %v534 = vadd.f32 %v521, %v530
      %v535 = vadd.f32 %v522, %v531
      %v536 = vadd.f32 %v523, %v532
      %v537 = vadd.f32 %v524, %v533
      %v538 = vld [vmem:[%s2 + $0x3] sm:$0x1]
      %v539 = vlaneseq
      %v540 = vshrl.u32 %v539, 7
      %v541 = vsub.s32 0, %v540
      %v542 = vrot.slane %v538, %v541
      %v543 = vmul.f32 %v475, %v542
      %v544 = vmul.f32 %v476, %v542
      %v545 = vmul.f32 %v477, %v542
      %v546 = vmul.f32 %v478, %v542
      %v547 = vadd.f32 %v534, %v543
      %v548 = vadd.f32 %v535, %v544
      %v549 = vadd.f32 %v536, %v545
      %v550 = vadd.f32 %v537, %v546
      %v551 = vld [vmem:[%s2 + $0x4] sm:$0x1]
      %v552 = vlaneseq
      %v553 = vshrl.u32 %v552, 7
      %v554 = vsub.s32 0, %v553
      %v555 = vrot.slane %v551, %v554
      %v556 = vmul.f32 %v450, %v555
      %v557 = vmul.f32 %v451, %v555
      %v558 = vmul.f32 %v452, %v555
      %v559 = vmul.f32 %v453, %v555
      %v560 = vadd.f32 %v547, %v556
      %v561 = vadd.f32 %v548, %v557
      %v562 = vadd.f32 %v549, %v558
      %v563 = vadd.f32 %v550, %v559
      %v564 = vld [vmem:[%s2 + $0x5] sm:$0x1]
      %v565 = vlaneseq
      %v566 = vshrl.u32 %v565, 7
      %v567 = vsub.s32 0, %v566
      %v568 = vrot.slane %v564, %v567
      %v569 = vmul.f32 %v494, %v568
      %v570 = vmul.f32 %v495, %v568
      %v571 = vmul.f32 %v496, %v568
      %v572 = vmul.f32 %v497, %v568
      %v573 = vadd.f32 %v560, %v569
      %v574 = vadd.f32 %v561, %v570
      %v575 = vadd.f32 %v562, %v571
      %v576 = vadd.f32 %v563, %v572
      %v577 = vld [vmem:[%s2 + $0x6] sm:$0x1]
      %v578 = vlaneseq
      %v579 = vshrl.u32 %v578, 7
      %v580 = vsub.s32 0, %v579
      %v581 = vrot.slane %v577, %v580
      %v582 = vmul.f32 %v476, %v581
      %v583 = vmul.f32 %v477, %v581
      %v584 = vmul.f32 %v478, %v581
      %v585 = vmul.f32 %v479, %v581
      %v586 = vadd.f32 %v573, %v582
      %v587 = vadd.f32 %v574, %v583
      %v588 = vadd.f32 %v575, %v584
      %v589 = vadd.f32 %v576, %v585
      %v590 = vld [vmem:[%s2 + $0x7] sm:$0x1]
      %v591 = vlaneseq
      %v592 = vshrl.u32 %v591, 7
      %v593 = vsub.s32 0, %v592
      %v594 = vrot.slane %v590, %v593
      %v595 = vmul.f32 %v451, %v594
      %v596 = vmul.f32 %v452, %v594
      %v597 = vmul.f32 %v453, %v594
      %v598 = vmul.f32 %v454, %v594
      %v599 = vadd.f32 %v586, %v595
      %v600 = vadd.f32 %v587, %v596
      %v601 = vadd.f32 %v588, %v597
      %v602 = vadd.f32 %v589, %v598
      %v603 = vld [vmem:[%s2 + $0x8] sm:$0x1]
      %v604 = vlaneseq
      %v605 = vshrl.u32 %v604, 7
      %v606 = vsub.s32 0, %v605
      %v607 = vrot.slane %v603, %v606
      %v608 = vmul.f32 %v495, %v607
      %v609 = vmul.f32 %v496, %v607
      %v610 = vmul.f32 %v497, %v607
      %v611 = vmul.f32 %v498, %v607
      %v612 = vadd.f32 %v599, %v608
      %v613 = vadd.f32 %v600, %v609
      %v614 = vadd.f32 %v601, %v610
      %v615 = vadd.f32 %v602, %v611
      %v616 = vld [vmem:[%s4 + $0x1] sm:$0x1]
      %v617 = vlaneseq
      %v618 = vshrl.u32 %v617, 7
      %v619 = vsub.s32 0, %v618
      %v620 = vrot.slane %v616, %v619
      %v621 = vadd.f32 %v612, %v620
      %v622 = vadd.f32 %v613, %v620
      %v623 = vadd.f32 %v614, %v620
      %v624 = vadd.f32 %v615, %v620
      %v625 = vmax.f32 %v621, 0.0
      %v626 = vmax.f32 %v622, 0.0
      %v627 = vmax.f32 %v623, 0.0
      %v628 = vmax.f32 %v624, 0.0
      %v629 = vpack.c.bf16 %v626, %v625
      %v630 = vpack.c.bf16 %v628, %v627
      %v631 = vld [vmem:[%s3] sm:$0xf]
      %v632 = vld [vmem:[%s3 + $0x4] sm:$0xf]
      %v633 = vld [vmem:[%s3 + $0x8] sm:$0xf]
      %v634 = vld [vmem:[%s3 + $0xc] sm:$0xf]
      %v635 = vld [vmem:[%s3 + $0x10] sm:$0xf]
      %v636 = vld [vmem:[%s3 + $0x14] sm:$0xf]
      %v637 = vld [vmem:[%s3 + $0x18] sm:$0xf]
      %v638 = vld [vmem:[%s3 + $0x1c] sm:$0xf]
      %v639 = vld [vmem:[%s3 + $0x20] sm:$0xf]
      %v640 = vld [vmem:[%s3 + $0x24] sm:$0xf]
      %v641 = vld [vmem:[%s3 + $0x28] sm:$0xf]
      %v642 = vld [vmem:[%s3 + $0x2c] sm:$0xf]
      %v643 = vld [vmem:[%s3 + $0x30] sm:$0xf]
      %v644 = vld [vmem:[%s3 + $0x34] sm:$0xf]
      %v645 = vld [vmem:[%s3 + $0x38] sm:$0xf]
      %v646 = vld [vmem:[%s3 + $0x3c] sm:$0xf]
      %v647 = vld [vmem:[%s5] sm:$0x1]
      %v649 = vlaneseq
      %v650 = vshrl.u32 %v649, 7
      %v651 = vsub.s32 0, %v650
      %v652 = vrot.slane %v647, %v651
      %v670 = vunpack.c.l.b16 %v631
      %v671 = vunpack.c.l.b16 %v632
      %v672 = vunpack.c.l.b16 %v633
      %v673 = vunpack.c.l.b16 %v634
      %v674 = vunpack.c.l.b16 %v635
      %v675 = vunpack.c.l.b16 %v636
      %v676 = vunpack.c.l.b16 %v637
      %v677 = vunpack.c.l.b16 %v638
      %v678 = vunpack.c.l.b16 %v639
      %v679 = vunpack.c.l.b16 %v640
      %v680 = vunpack.c.l.b16 %v641
      %v681 = vunpack.c.l.b16 %v642
      %v682 = vunpack.c.l.b16 %v643
      %v683 = vunpack.c.l.b16 %v644
      %v684 = vunpack.c.l.b16 %v645
      %v685 = vunpack.c.l.b16 %v646
      %v686 = vpack.c.b16 %v671, %v670
      %v687 = vpack.c.b16 %v673, %v672
      %v688 = vpack.c.b16 %v675, %v674
      %v689 = vpack.c.b16 %v677, %v676
      %v690 = vpack.c.b16 %v679, %v678
      %v691 = vpack.c.b16 %v681, %v680
      %v692 = vpack.c.b16 %v683, %v682
      %v693 = vpack.c.b16 %v685, %v684
      %702 = vmatprep.subr.bf16.mxu0 0
      %703 = vmatpush1.bf16.msra.mxu0 %v686
      %704 = vmatprep.subr.bf16.mxu0 0
      %705 = vmatpush1.bf16.msra.mxu0 %v687
      %706 = vmatprep.subr.bf16.mxu0 0
      %707 = vmatpush1.bf16.msra.mxu0 %v688
      %708 = vmatprep.subr.bf16.mxu0 0
      %709 = vmatpush1.bf16.msra.mxu0 %v689
      %710 = vmatprep.subr.bf16.mxu0 0
      %711 = vmatpush1.bf16.msra.mxu0 %v690
      %712 = vmatprep.subr.bf16.mxu0 0
      %713 = vmatpush1.bf16.msra.mxu0 %v691
      %714 = vmatprep.subr.bf16.mxu0 0
      %715 = vmatpush1.bf16.msra.mxu0 %v692
      %716 = vmatprep.subr.bf16.mxu0 0
      %717 = vmatpush1.bf16.msra.mxu0 %v693
      %718 = vmatprep.subr.bf16.mxu0 0
      %719 = vmatpush1.bf16.msra.mxu0 0
      %720 = vmatprep.subr.bf16.mxu0 0
      %721 = vmatpush1.bf16.msra.mxu0 0
      %722 = vmatprep.subr.bf16.mxu0 0
      %723 = vmatpush1.bf16.msra.mxu0 0
      %724 = vmatprep.subr.bf16.mxu0 0
      %725 = vmatpush1.bf16.msra.mxu0 0
      %726 = vmatprep.subr.bf16.mxu0 0
      %727 = vmatpush1.bf16.msra.mxu0 0
      %728 = vmatprep.subr.bf16.mxu0 0
      %729 = vmatpush1.bf16.msra.mxu0 0
      %730 = vmatprep.subr.bf16.mxu0 0
      %731 = vmatpush1.bf16.msra.mxu0 0
      %732 = vmatprep.subr.bf16.mxu0 0
      %733 = vmatpush1.bf16.msra.mxu0 0
      %734 = vmatprep.mubr.bf16.mxu0 0
      %735 = vmatmul.mubr.bf16.gmra.mrb[0].mxu0 %v629
      %v736 = vpop.f32.mrb[0].mxu0
      %v737 = vadd.f32 %v652, %v736
      %v738 = vpop.f32.mrb[0].mxu0
      %v739 = vpop.f32.mrb[0].mxu0
      %v740 = vadd.f32 %v652, %v739
      %v741 = vpop.f32.mrb[0].mxu0
      %742 = vmatprep.mubr.bf16.mxu0 0
      %743 = vmatmul.mubr.bf16.gmra.mrb[0].mxu0 %v630
      %v744 = vpop.f32.mrb[0].mxu0
      %v745 = vadd.f32 %v652, %v744
      %v746 = vpop.f32.mrb[0].mxu0
      %v747 = vpop.f32.mrb[0].mxu0
      %v748 = vadd.f32 %v652, %v747
      %v749 = vpop.f32.mrb[0].mxu0
      %750 = vdwg.mxu0
      %v751 = vmax.f32 %v737, 0.0
      %v752 = vmax.f32 %v740, 0.0
      %v753 = vmax.f32 %v745, 0.0
      %v754 = vmax.f32 %v748, 0.0
      %v755 = vpack.c.bf16 %v751, %v751
      %v756 = vpack.c.bf16 %v752, %v752
      %v757 = vpack.c.bf16 %v753, %v753
      %v758 = vpack.c.bf16 %v754, %v754
      %vm759 = vcmask 125952
      %760 = vst.msk [vmem:[%s287] sm:$0xf] %vm759, %v755
      %761 = vst.msk [vmem:[%s287 + $0x4] sm:$0xf] %vm759, %v756
      %762 = vst.msk [vmem:[%s287 + $0x8] sm:$0xf] %vm759, %v757
      %763 = vst.msk [vmem:[%s287 + $0xc] sm:$0xf] %vm759, %v758
      %s764 = smul.u32 4, %s22
      %p765 = scmp.lt.s32.totalorder %s21, 1
      %s766 = scalar_select %p765, %s21, 1
      %p767 = scmp.lt.s32.totalorder %s764, 7
      %s768 = scalar_select %p767, %s764, 7
      %s769 = smul.addr %s766, 8
      %s770 = sadd.s32 %s768, %s769
      %s771 = smul.addr %s770, 4
      %s772 = scalar_lea.vmem %s6, %s771
      // Predicated region
      $region45: #{mnas_init_block.1} parent=43 // pred_check
        %p773 = pneg %p182
      $region46: #{mnas_init_block.1} parent=43 // pred_check_branch
        %775 = sbr.rel (%p773) target = $region48
      $region47: #{mnas_init_block.1} parent=43 // pred_region
        %s776 = smul.u32 4, %s22
      $region48: #{mnas_init_block.1} parent=43 // pred_fallthru
        _
    $region44: #{mnas_init_block.1} parent=5 // pred_fallthru
      _
    %p777 = scmp.le.s32.totalorder 2, %s12
    // Predicated region
    $region49: #{mnas_init_block.1} parent=5 // pred_check
      %p778 = pneg %p777
    $region50: #{mnas_init_block.1} parent=5 // pred_check_branch
      %780 = sbr.rel (%p778) target = $region52
    $region51: #{mnas_init_block.1} parent=5 // pred_region
      %s781 = ssub.s32 %s12, 2
      // Predicated region
      $region53: #{mnas_init_block.1} parent=51 // pred_check
        %p782 = pneg %p188
      $region54: #{mnas_init_block.1} parent=51 // pred_check_branch
        %784 = sbr.rel (%p782) target = $region56
      $region55: #{mnas_init_block.1} parent=51 // pred_region
        %s785 = smul.u32 4, %s24
        %p786 = scmp.lt.s32.totalorder %s23, 1
        %s787 = scalar_select %p786, %s23, 1
        %p788 = scmp.lt.s32.totalorder %s785, 7
        %s789 = scalar_select %p788, %s785, 7
        %s790 = smul.addr %s787, 8
        %s791 = sadd.s32 %s789, %s790
        %s792 = smul.addr %s791, 4
        %s793 = scalar_lea.vmem %s6, %s792
      $region56: #{mnas_init_block.1} parent=51 // pred_fallthru
        _
    $region52: #{mnas_init_block.1} parent=5 // pred_fallthru
      _
  $region6: #{mnas_init_block.1} parent=0 // loop_footer
    %s16 = sadd.s32 1, %s12
  $region7: #{mnas_init_block.1} parent=0 // loop_footer_branch
    %11 = sbr.rel target = $region3
  $region8: #{mnas_init_block.1} parent=0 // loop_exit
    _

</llo_original>
